<compile_context>
chip_gen: v6e
topology: v6e:2x2x1
jax: 0.10.0
libtpu: 0.0.40
codegen_flags: <defaults>
</compile_context>

<pallas_src>
import functools

import jax
import jax.numpy as jnp
from jax.experimental import pallas as pl
from jax.experimental.pallas import tpu as pltpu

LANES = 128


# ---------------------------------------------------------------------------
# One-time parameter packing (hoisted out of the per-step path)
# ---------------------------------------------------------------------------
def prepare_params(params, D_in, R, H):
    """Pack nn.Linear weights into two lane-dense (128,128) slabs.

    Combined-slab lane layout (width 128):
        [0, D_in)        : x
        [D_in, D_in+R)   : hidden
        D_in+R           : constant 1.0 (bias lane)
        rest             : 0
    Activation (act = relu(combined @ W1)) lane layout:
        [0, R)           : new_hidden
        [R, R+H)         : fc1 activations
        R+H              : constant 1.0 (passed through, relu(1)=1)
    Output slab (act @ W2) lane layout:
        [D_in, D_in+R)         : new_hidden   (identity block in W2)
        [out_col, out_col+2)   : output       (out_col = D_in+R+1, a zero row of W1)
    """
    K = D_in + R
    out_col = K + 1
    assert D_in >= 2 and K + 1 <= LANES and R + H + 1 <= LANES
    assert out_col + 2 <= LANES

    w1 = jnp.zeros((LANES, LANES), jnp.float32)
    w1 = w1.at[:K, 0:R].set(params["w_hid"].T.astype(jnp.float32))
    w1 = w1.at[K, 0:R].set(params["b_hid"].astype(jnp.float32))
    w1 = w1.at[:K, R:R + H].set(params["w_fc1"].T.astype(jnp.float32))
    w1 = w1.at[K, R:R + H].set(params["b_fc1"].astype(jnp.float32))
    w1 = w1.at[K, R + H].set(1.0)                       # constant-1 passthrough lane

    w2 = jnp.zeros((LANES, LANES), jnp.float32)
    w2 = w2.at[R:R + H, out_col:out_col + 2].set(params["w_out"].T.astype(jnp.float32))
    w2 = w2.at[R + H, out_col:out_col + 2].set(params["b_out"].astype(jnp.float32))
    w2 = w2.at[0:R, D_in:D_in + R].set(jnp.eye(R, dtype=jnp.float32))

    return dict(w1=w1, w2=w2, D_in=D_in, R=R, H=H, out_col=out_col)


# ---------------------------------------------------------------------------
# Single-step kernel: 2 MXU pushes, one lane-dense (1,128) store
# ---------------------------------------------------------------------------
def one_step_kernel(c_ref, w1_ref, w2_ref, o_ref):
    act = jnp.maximum(
        jnp.dot(c_ref[...], w1_ref[...], preferred_element_type=jnp.float32), 0.0)
    o_ref[...] = jnp.dot(act, w2_ref[...], preferred_element_type=jnp.float32)


def one_step_rnn_forward(x, hidden, prepped):
    """x: (D_in,), hidden: (R,) -> (output (1,2), new_hidden (R,))."""
    D_in, R, out_col = prepped["D_in"], prepped["R"], prepped["out_col"]
    K = D_in + R

    combined = jnp.zeros((1, LANES), jnp.float32)
    combined = combined.at[0, :D_in].set(x)
    combined = combined.at[0, D_in:K].set(hidden)
    combined = combined.at[0, K].set(1.0)

    slab = pl.pallas_call(
        one_step_kernel,
        out_shape=jax.ShapeDtypeStruct((1, LANES), jnp.float32),
        in_specs=[
            pl.BlockSpec((1, LANES), lambda: (0, 0)),
            pl.BlockSpec((LANES, LANES), lambda: (0, 0)),
            pl.BlockSpec((LANES, LANES), lambda: (0, 0)),
        ],
        out_specs=pl.BlockSpec((1, LANES), lambda: (0, 0)),
    )(combined, prepped["w1"], prepped["w2"])

    out = slab[:, out_col:out_col + 2]       # (1, 2)
    new_hidden = slab[0, D_in:K]             # (R,)
    return out, new_hidden


# ---------------------------------------------------------------------------
# Sequence kernel: grid=(T,), weights VMEM-resident, hidden carried in scratch
# ---------------------------------------------------------------------------
def rnn_sequence_kernel(x_ref, w1_ref, w2_ref, o_ref, h_carry):
    t = pl.program_id(0)

    @pl.when(t == 0)
    def _():
        h_carry[...] = jnp.zeros_like(h_carry)

    # Output lanes of the carried slab sit on zero rows of W1, so the carry
    # needs no masking: combined = x_slab + carried slab.
    combined = x_ref[0] + h_carry[...]                                 # (1, 128)
    act = jnp.maximum(
        jnp.dot(combined, w1_ref[...], preferred_element_type=jnp.float32), 0.0)
    slab = jnp.dot(act, w2_ref[...], preferred_element_type=jnp.float32)
    o_ref[0] = slab
    h_carry[...] = slab


def rnn_sequence_forward(xs, prepped):
    """xs: (T, D_in) -> (outputs (T, 2), hiddens (T, R)). hidden starts at zeros."""
    T = xs.shape[0]
    D_in, R, out_col = prepped["D_in"], prepped["R"], prepped["out_col"]
    K = D_in + R

    x_slabs = jnp.zeros((T, 1, LANES), jnp.float32)
    x_slabs = x_slabs.at[:, 0, :D_in].set(xs)
    x_slabs = x_slabs.at[:, 0, K].set(1.0)

    slabs = pl.pallas_call(
        rnn_sequence_kernel,
        out_shape=jax.ShapeDtypeStruct((T, 1, LANES), jnp.float32),
        grid=(T,),
        in_specs=[
            pl.BlockSpec((1, 1, LANES), lambda t: (t, 0, 0)),
            pl.BlockSpec((LANES, LANES), lambda t: (0, 0)),   # resident in VMEM
            pl.BlockSpec((LANES, LANES), lambda t: (0, 0)),   # resident in VMEM
        ],
        out_specs=pl.BlockSpec((1, 1, LANES), lambda t: (t, 0, 0)),
        scratch_shapes=[pltpu.VMEM((1, LANES), jnp.float32)],
        compiler_params=pltpu.CompilerParams(dimension_semantics=("arbitrary",)),
    )(x_slabs, prepped["w1"], prepped["w2"])

    slabs = slabs[:, 0, :]                               # (T, 128)
    outputs = slabs[:, out_col:out_col + 2]              # (T, 2)
    hiddens = slabs[:, D_in:K]                           # (T, R)
    return outputs, hiddens


# ---------------------------------------------------------------------------
# Init + pure-JAX reference
# ---------------------------------------------------------------------------
def init_params(key, D_in, R, H):
    ks = jax.random.split(key, 6)

    def lin(kw, kb, fan_in, fan_out):
        bound = 1.0 / jnp.sqrt(float(fan_in))
        w = jax.random.uniform(kw, (fan_out, fan_in), jnp.float32, -bound, bound)
        b = jax.random.uniform(kb, (fan_out,), jnp.float32, -bound, bound)
        return w, b

    w_hid, b_hid = lin(ks[0], ks[1], D_in + R, R)
    w_fc1, b_fc1 = lin(ks[2], ks[3], D_in + R, H)
    w_out, b_out = lin(ks[4], ks[5], H, 2)
    return dict(w_hid=w_hid, b_hid=b_hid,
                w_fc1=w_fc1, b_fc1=b_fc1,
                w_out=w_out, b_out=b_out)


def reference_forward(x, hidden, params):
    combined = jnp.concatenate([x, hidden], axis=0)
    new_hidden = jax.nn.relu(params["w_hid"] @ combined + params["b_hid"])
    fc1 = jax.nn.relu(params["w_fc1"] @ combined + params["b_fc1"])
    out = params["w_out"] @ fc1 + params["b_out"]
    return out.reshape(-1, 2), new_hidden


# ---------------------------------------------------------------------------
if __name__ == "__main__":
    D_in, R, H = 16, 32, 32
    T = 8

    key = jax.random.PRNGKey(0)
    k_p, k_x, k_seq = jax.random.split(key, 3)
    params = init_params(k_p, D_in, R, H)
    prepped = prepare_params(params, D_in, R, H)

    # --- single step (matches module.forward(x, initHidden())) ---
    x = jax.random.normal(k_x, (D_in,), jnp.float32)
    hidden0 = jnp.zeros((R,), jnp.float32)               # == initHidden()

    out, new_h = one_step_rnn_forward(x, hidden0, prepped)
    out = jax.block_until_ready(out)
    new_h = jax.block_until_ready(new_h)

    ref_out, ref_h = reference_forward(x, hidden0, params)
    assert out.shape == (1, 2) and new_h.shape == (R,)
    assert jnp.allclose(out, ref_out, atol=1e-4, rtol=1e-4)
    assert jnp.allclose(new_h, ref_h, atol=1e-4, rtol=1e-4)

    # --- sequence version (recurrence inside one pallas_call) ---
    xs = jax.random.normal(k_seq, (T, D_in), jnp.float32)
    seq_out, seq_hid = rnn_sequence_forward(xs, prepped)
    seq_out = jax.block_until_ready(seq_out)
    seq_hid = jax.block_until_ready(seq_hid)

    h = hidden0
    ref_outs, ref_hids = [], []
    for t in range(T):
        o, h = reference_forward(xs[t], h, params)
        ref_outs.append(o[0])
        ref_hids.append(h)
    ref_outs = jnp.stack(ref_outs)
    ref_hids = jnp.stack(ref_hids)

    assert seq_out.shape == (T, 2) and seq_hid.shape == (T, R)
    assert jnp.allclose(seq_out, ref_outs, atol=1e-4, rtol=1e-4)
    assert jnp.allclose(seq_hid, ref_hids, atol=1e-4, rtol=1e-4)

    print("KERNEL_OK")
</pallas_src>

<mosaic_0001>
module attributes {stable_mosaic.version = 11 : i64} {
  func.func @one_step_kernel(%arg0: memref<1x128xf32, #tpu.memory_space<vmem>>, %arg1: memref<128x128xf32, #tpu.memory_space<vmem>>, %arg2: memref<128x128xf32, #tpu.memory_space<vmem>>, %arg3: memref<1x128xf32, #tpu.memory_space<vmem>>) attributes {dimension_semantics = [], scalar_prefetch = 0 : i64, scratch_operands = 0 : i64, tpu.core_type = #tpu.core_type<tc>} {
    %c0 = arith.constant 0 : index
    %c0_0 = arith.constant 0 : index
    %0 = vector.load %arg0[%c0, %c0_0] : memref<1x128xf32, #tpu.memory_space<vmem>>, vector<1x128xf32>
    %c0_1 = arith.constant 0 : index
    %c0_2 = arith.constant 0 : index
    %1 = vector.load %arg1[%c0_1, %c0_2] : memref<128x128xf32, #tpu.memory_space<vmem>>, vector<128x128xf32>
    %cst = arith.constant dense<0.000000e+00> : vector<1x128xf32>
    %2 = tpu.matmul %0, %1, %cst {dimension_numbers = #tpu.dot_dimension_numbers<[1], [0], [0], [1], [0, 0, 1, 1], [], []>} : vector<1x128xf32>, vector<128x128xf32>, vector<1x128xf32> -> vector<1x128xf32>
    %cst_3 = arith.constant 0.000000e+00 : f32
    %3 = vector.broadcast %cst_3 : f32 to vector<1x128xf32>
    %4 = arith.maximumf %2, %3 : vector<1x128xf32>
    %c0_4 = arith.constant 0 : index
    %c0_5 = arith.constant 0 : index
    %5 = vector.load %arg2[%c0_4, %c0_5] : memref<128x128xf32, #tpu.memory_space<vmem>>, vector<128x128xf32>
    %cst_6 = arith.constant dense<0.000000e+00> : vector<1x128xf32>
    %6 = tpu.matmul %4, %5, %cst_6 {dimension_numbers = #tpu.dot_dimension_numbers<[1], [0], [0], [1], [0, 0, 1, 1], [], []>} : vector<1x128xf32>, vector<128x128xf32>, vector<1x128xf32> -> vector<1x128xf32>
    %c0_7 = arith.constant 0 : index
    %c0_8 = arith.constant 0 : index
    %7 = vector.load %arg3[%c0_7, %c0_8] : memref<1x128xf32, #tpu.memory_space<vmem>>, vector<1x128xf32>
    tpu.vector_store %arg3[%c0_7, %c0_8], %6 {strides = array<i32>} : memref<1x128xf32, #tpu.memory_space<vmem>>, vector<1x128xf32>,
    return
  }
}

</mosaic_0001>

<llo_original>
// kernel: tpu_custom_call.1
$region0: #{tpu_custom_call.1}
  #allocation0 [shape = 'u32[]', space=smem, size = 0x4, offset = 0x4, fixed_abs, tag = 'smem constant byte address 0x4 - core index']
  #allocation1 [shape = 'u32[144,128]{1,0:T(1,128)}', space=vmem, size = 0x12000, scoped, tag = 'internal scratch']
  %s0 = inlined_call_operand.hbm [shape: f32[1,128], index: 0, kind: input, shape index: {}]
  %s1 = inlined_call_operand.hbm [shape: f32[128,128], index: 1, kind: input, shape index: {}]
  %s2 = inlined_call_operand.hbm [shape: f32[128,128], index: 2, kind: input, shape index: {}]
  %s3 = inlined_call_operand.hbm [shape: f32[1,128], index: 3, kind: output, shape index: {}]
  %s4 = sld [smem:[#allocation0]]
  $region34: #{tpu_custom_call.1} parent=0
    _
  %s6 = ssub.s32 1, %s4
  %s7 = scalar_select 0, %s6, %s4
  $region1: #{tpu_custom_call.1} parent=0
    #allocation2 [shape = 'u8[512]{0}', space=vmem, size = 0x400, scoped, tag = 'input window, operand 0, single buffered']
    #allocation3 [shape = 's32[1]{0}', space=sflag, size = 0x4, scoped, tag = 'scoped memory for tpu_custom_call.1']
    #allocation4 [shape = 's32[1]{0}', space=sflag, size = 0x4, scoped, tag = 'scoped memory for tpu_custom_call.1']
    #allocation5 [shape = 'u8[65536]{0}', space=vmem, size = 0x10000, scoped, tag = 'input window, operand 1, single buffered']
    #allocation6 [shape = 's32[1]{0}', space=sflag, size = 0x4, scoped, tag = 'scoped memory for tpu_custom_call.1']
    #allocation7 [shape = 'u8[65536]{0}', space=vmem, size = 0x10000, scoped, tag = 'input window, operand 2, single buffered']
    #allocation8 [shape = 'u8[512]{0}', space=vmem, size = 0x400, scoped, tag = 'output window, operand 0, single buffered']
    %8 = vsyncpa [#allocation3], 0
    %9 = vsyncpa [#allocation6], 0
    %10 = vsyncpa [#allocation4], 0
    // Predicated region
    $region2: #{tpu_custom_call.1} parent=1 // pred_check
      _
    $region3: #{tpu_custom_call.1} parent=1 // pred_check_branch
      %12 = sbr.rel (0) target = $region5
    $region4: #{tpu_custom_call.1} parent=1 // pred_region
      %s14 = ssub.s32 16, 16
      %15 = vsyncadd [#allocation3], %s14
      %s17 = sshll.u32 [#allocation2], 4
      %s18 = int_to_ptr.vmem [resolvable:$true] %s17
      %20 = dma.hbm_to_vmem [thread:$0]  %s0, 16, %s18, [#allocation3]
    $region5: #{tpu_custom_call.1} parent=1 // pred_fallthru
      _
    // Predicated region
    $region6: #{tpu_custom_call.1} parent=1 // pred_check
      _
    $region7: #{tpu_custom_call.1} parent=1 // pred_check_branch
      %22 = sbr.rel (0) target = $region9
    $region8: #{tpu_custom_call.1} parent=1 // pred_region
      %s24 = ssub.s32 2048, 2048
      %25 = vsyncadd [#allocation6], %s24
      %s26 = sshll.u32 [#allocation5], 4
      %s27 = int_to_ptr.vmem [resolvable:$true] %s26
      %32 = dma.hbm_to_vmem [thread:$0]  %s1, 2048, %s27, [#allocation6], 128, 128, 8
    $region9: #{tpu_custom_call.1} parent=1 // pred_fallthru
      _
    // Predicated region
    $region10: #{tpu_custom_call.1} parent=1 // pred_check
      _
    $region11: #{tpu_custom_call.1} parent=1 // pred_check_branch
      %34 = sbr.rel (0) target = $region13
    $region12: #{tpu_custom_call.1} parent=1 // pred_region
      %s36 = ssub.s32 2048, 2048
      %37 = vsyncadd [#allocation6], %s36
      %s38 = sshll.u32 [#allocation7], 4
      %s39 = int_to_ptr.vmem [resolvable:$true] %s38
      %44 = dma.hbm_to_vmem [thread:$0]  %s2, 2048, %s39, [#allocation6], 128, 128, 8
    $region13: #{tpu_custom_call.1} parent=1 // pred_fallthru
      _
    // Predicated region
    $region14: #{tpu_custom_call.1} parent=1 // pred_check
      _
    $region15: #{tpu_custom_call.1} parent=1 // pred_check_branch
      %46 = sbr.rel (0) target = $region17
    $region16: #{tpu_custom_call.1} parent=1 // pred_region
      %47 = dma.done [#allocation3], 16
    $region17: #{tpu_custom_call.1} parent=1 // pred_fallthru
      _
    // Predicated region
    $region18: #{tpu_custom_call.1} parent=1 // pred_check
      _
    $region19: #{tpu_custom_call.1} parent=1 // pred_check_branch
      %49 = sbr.rel (0) target = $region21
    $region20: #{tpu_custom_call.1} parent=1 // pred_region
      %50 = dma.done [#allocation6], 2048
    $region21: #{tpu_custom_call.1} parent=1 // pred_fallthru
      _
    // Predicated region
    $region22: #{tpu_custom_call.1} parent=1 // pred_check
      _
    $region23: #{tpu_custom_call.1} parent=1 // pred_check_branch
      %52 = sbr.rel (0) target = $region25
    $region24: #{tpu_custom_call.1} parent=1 // pred_region
      %53 = dma.done [#allocation6], 2048
    $region25: #{tpu_custom_call.1} parent=1 // pred_fallthru
      _
    %v54 = vld [vmem:[#allocation2] sm:$0x1]
    %v55 = vld [vmem:[#allocation5] sm:$0xff]
    %v56 = vld [vmem:[#allocation5 + $0x8] sm:$0xff]
    %v57 = vld [vmem:[#allocation5 + $0x10] sm:$0xff]
    %v58 = vld [vmem:[#allocation5 + $0x18] sm:$0xff]
    %v59 = vld [vmem:[#allocation5 + $0x20] sm:$0xff]
    %v60 = vld [vmem:[#allocation5 + $0x28] sm:$0xff]
    %v61 = vld [vmem:[#allocation5 + $0x30] sm:$0xff]
    %v62 = vld [vmem:[#allocation5 + $0x38] sm:$0xff]
    %v63 = vld [vmem:[#allocation5 + $0x40] sm:$0xff]
    %v64 = vld [vmem:[#allocation5 + $0x48] sm:$0xff]
    %v65 = vld [vmem:[#allocation5 + $0x50] sm:$0xff]
    %v66 = vld [vmem:[#allocation5 + $0x58] sm:$0xff]
    %v67 = vld [vmem:[#allocation5 + $0x60] sm:$0xff]
    %v68 = vld [vmem:[#allocation5 + $0x68] sm:$0xff]
    %v69 = vld [vmem:[#allocation5 + $0x70] sm:$0xff]
    %v70 = vld [vmem:[#allocation5 + $0x78] sm:$0xff]
    %71 = vmatprep.subr.mxu0 0.0
    %72 = vmatpush1.msra.mxu0 %v70
    %73 = vmatprep.subr.mxu0 0.0
    %74 = vmatpush1.msra.mxu0 %v69
    %75 = vmatprep.subr.mxu0 0.0
    %76 = vmatpush1.msra.mxu0 %v68
    %77 = vmatprep.subr.mxu0 0.0
    %78 = vmatpush1.msra.mxu0 %v67
    %79 = vmatprep.subr.mxu0 0.0
    %80 = vmatpush1.msra.mxu0 %v66
    %81 = vmatprep.subr.mxu0 0.0
    %82 = vmatpush1.msra.mxu0 %v65
    %83 = vmatprep.subr.mxu0 0.0
    %84 = vmatpush1.msra.mxu0 %v64
    %85 = vmatprep.subr.mxu0 0.0
    %86 = vmatpush1.msra.mxu0 %v63
    %87 = vmatprep.subr.mxu0 0.0
    %88 = vmatpush1.msra.mxu0 %v62
    %89 = vmatprep.subr.mxu0 0.0
    %90 = vmatpush1.msra.mxu0 %v61
    %91 = vmatprep.subr.mxu0 0.0
    %92 = vmatpush1.msra.mxu0 %v60
    %93 = vmatprep.subr.mxu0 0.0
    %94 = vmatpush1.msra.mxu0 %v59
    %95 = vmatprep.subr.mxu0 0.0
    %96 = vmatpush1.msra.mxu0 %v58
    %97 = vmatprep.subr.mxu0 0.0
    %98 = vmatpush1.msra.mxu0 %v57
    %99 = vmatprep.subr.mxu0 0.0
    %100 = vmatpush1.msra.mxu0 %v56
    %101 = vmatprep.subr.mxu0 0.0
    %102 = vmatpush1.msra.mxu0 %v55
    %103 = vmatprep.subr.mxu0 0.0
    %104 = vmatpush2.msra.mxu0 0.0
    %105 = vmatprep.subr.mxu0 0.0
    %106 = vmatpush2.msra.mxu0 0.0
    %107 = vmatprep.subr.mxu0 0.0
    %108 = vmatpush2.msra.mxu0 0.0
    %109 = vmatprep.subr.mxu0 0.0
    %110 = vmatpush2.msra.mxu0 0.0
    %111 = vmatprep.subr.mxu0 0.0
    %112 = vmatpush2.msra.mxu0 0.0
    %113 = vmatprep.subr.mxu0 0.0
    %114 = vmatpush2.msra.mxu0 0.0
    %115 = vmatprep.subr.mxu0 0.0
    %116 = vmatpush2.msra.mxu0 0.0
    %117 = vmatprep.subr.mxu0 0.0
    %118 = vmatpush2.msra.mxu0 0.0
    %119 = vmatprep.subr.mxu0 0.0
    %120 = vmatpush2.msra.mxu0 0.0
    %121 = vmatprep.subr.mxu0 0.0
    %122 = vmatpush2.msra.mxu0 0.0
    %123 = vmatprep.subr.mxu0 0.0
    %124 = vmatpush2.msra.mxu0 0.0
    %125 = vmatprep.subr.mxu0 0.0
    %126 = vmatpush2.msra.mxu0 0.0
    %127 = vmatprep.subr.mxu0 0.0
    %128 = vmatpush2.msra.mxu0 0.0
    %129 = vmatprep.subr.mxu0 0.0
    %130 = vmatpush2.msra.mxu0 0.0
    %131 = vmatprep.subr.mxu0 0.0
    %132 = vmatpush2.msra.mxu0 0.0
    %133 = vmatprep.subr.mxu0 0.0
    %134 = vmatpush2.msra.mxu0 0.0
    %135 = vmatprep.mubr.f32.mxu0 0.0
    %136 = vmatmul.mubr.f32.gmra.mxu0 %v54
    %v137 = vpop.f32.mrf.mxu0
    %v138 = vadd.f32 0.0, %v137
    %v139 = vpop.f32.mrf.mxu0
    %140 = vdwg.mxu0
    %v141 = vmax.f32 %v138, 0.0
    %v142 = vld [vmem:[#allocation7] sm:$0xff]
    %v143 = vld [vmem:[#allocation7 + $0x8] sm:$0xff]
    %v144 = vld [vmem:[#allocation7 + $0x10] sm:$0xff]
    %v145 = vld [vmem:[#allocation7 + $0x18] sm:$0xff]
    %v146 = vld [vmem:[#allocation7 + $0x20] sm:$0xff]
    %v147 = vld [vmem:[#allocation7 + $0x28] sm:$0xff]
    %v148 = vld [vmem:[#allocation7 + $0x30] sm:$0xff]
    %v149 = vld [vmem:[#allocation7 + $0x38] sm:$0xff]
    %v150 = vld [vmem:[#allocation7 + $0x40] sm:$0xff]
    %v151 = vld [vmem:[#allocation7 + $0x48] sm:$0xff]
    %v152 = vld [vmem:[#allocation7 + $0x50] sm:$0xff]
    %v153 = vld [vmem:[#allocation7 + $0x58] sm:$0xff]
    %v154 = vld [vmem:[#allocation7 + $0x60] sm:$0xff]
    %v155 = vld [vmem:[#allocation7 + $0x68] sm:$0xff]
    %v156 = vld [vmem:[#allocation7 + $0x70] sm:$0xff]
    %v157 = vld [vmem:[#allocation7 + $0x78] sm:$0xff]
    %158 = vmatprep.subr.mxu0 0.0
    %159 = vmatpush1.msra.mxu0 %v157
    %160 = vmatprep.subr.mxu0 0.0
    %161 = vmatpush1.msra.mxu0 %v156
    %162 = vmatprep.subr.mxu0 0.0
    %163 = vmatpush1.msra.mxu0 %v155
    %164 = vmatprep.subr.mxu0 0.0
    %165 = vmatpush1.msra.mxu0 %v154
    %166 = vmatprep.subr.mxu0 0.0
    %167 = vmatpush1.msra.mxu0 %v153
    %168 = vmatprep.subr.mxu0 0.0
    %169 = vmatpush1.msra.mxu0 %v152
    %170 = vmatprep.subr.mxu0 0.0
    %171 = vmatpush1.msra.mxu0 %v151
    %172 = vmatprep.subr.mxu0 0.0
    %173 = vmatpush1.msra.mxu0 %v150
    %174 = vmatprep.subr.mxu0 0.0
    %175 = vmatpush1.msra.mxu0 %v149
    %176 = vmatprep.subr.mxu0 0.0
    %177 = vmatpush1.msra.mxu0 %v148
    %178 = vmatprep.subr.mxu0 0.0
    %179 = vmatpush1.msra.mxu0 %v147
    %180 = vmatprep.subr.mxu0 0.0
    %181 = vmatpush1.msra.mxu0 %v146
    %182 = vmatprep.subr.mxu0 0.0
    %183 = vmatpush1.msra.mxu0 %v145
    %184 = vmatprep.subr.mxu0 0.0
    %185 = vmatpush1.msra.mxu0 %v144
    %186 = vmatprep.subr.mxu0 0.0
    %187 = vmatpush1.msra.mxu0 %v143
    %188 = vmatprep.subr.mxu0 0.0
    %189 = vmatpush1.msra.mxu0 %v142
    %190 = vmatprep.subr.mxu0 0.0
    %191 = vmatpush2.msra.mxu0 0.0
    %192 = vmatprep.subr.mxu0 0.0
    %193 = vmatpush2.msra.mxu0 0.0
    %194 = vmatprep.subr.mxu0 0.0
    %195 = vmatpush2.msra.mxu0 0.0
    %196 = vmatprep.subr.mxu0 0.0
    %197 = vmatpush2.msra.mxu0 0.0
    %198 = vmatprep.subr.mxu0 0.0
    %199 = vmatpush2.msra.mxu0 0.0
    %200 = vmatprep.subr.mxu0 0.0
    %201 = vmatpush2.msra.mxu0 0.0
    %202 = vmatprep.subr.mxu0 0.0
    %203 = vmatpush2.msra.mxu0 0.0
    %204 = vmatprep.subr.mxu0 0.0
    %205 = vmatpush2.msra.mxu0 0.0
    %206 = vmatprep.subr.mxu0 0.0
    %207 = vmatpush2.msra.mxu0 0.0
    %208 = vmatprep.subr.mxu0 0.0
    %209 = vmatpush2.msra.mxu0 0.0
    %210 = vmatprep.subr.mxu0 0.0
    %211 = vmatpush2.msra.mxu0 0.0
    %212 = vmatprep.subr.mxu0 0.0
    %213 = vmatpush2.msra.mxu0 0.0
    %214 = vmatprep.subr.mxu0 0.0
    %215 = vmatpush2.msra.mxu0 0.0
    %216 = vmatprep.subr.mxu0 0.0
    %217 = vmatpush2.msra.mxu0 0.0
    %218 = vmatprep.subr.mxu0 0.0
    %219 = vmatpush2.msra.mxu0 0.0
    %220 = vmatprep.subr.mxu0 0.0
    %221 = vmatpush2.msra.mxu0 0.0
    %222 = vmatprep.mubr.f32.mxu0 0.0
    %223 = vmatmul.mubr.f32.gmra.mxu0 %v141
    %v224 = vpop.f32.mrf.mxu0
    %v225 = vadd.f32 0.0, %v224
    %v226 = vpop.f32.mrf.mxu0
    %227 = vdwg.mxu0
    %228 = vst [vmem:[#allocation8] sm:$0x1] %v225
    // Predicated region
    $region26: #{tpu_custom_call.1} parent=1 // pred_check
      _
    $region27: #{tpu_custom_call.1} parent=1 // pred_check_branch
      %230 = sbr.rel (0) target = $region29
    $region28: #{tpu_custom_call.1} parent=1 // pred_region
      %s232 = ssub.s32 16, 16
      %233 = vsyncadd [#allocation4], %s232
      %s235 = sshll.u32 [#allocation8], 4
      %s236 = int_to_ptr.vmem [resolvable:$true] %s235
      %238 = dma.vmem_to_hbm [thread:$0]  %s236, 16, %s3, [#allocation4]
    $region29: #{tpu_custom_call.1} parent=1 // pred_fallthru
      _
    // Predicated region
    $region30: #{tpu_custom_call.1} parent=1 // pred_check
      _
    $region31: #{tpu_custom_call.1} parent=1 // pred_check_branch
      %240 = sbr.rel (0) target = $region33
    $region32: #{tpu_custom_call.1} parent=1 // pred_region
      %241 = dma.done [#allocation4], 16
    $region33: #{tpu_custom_call.1} parent=1 // pred_fallthru
      _
    %242 = vsyncpa [#allocation3], 1
    %243 = vsyncpa [#allocation6], 1
    %244 = vsyncpa [#allocation4], 1

</llo_original>
